<compile_context>
chip_gen: v7x
topology: tpu7x:2x2x1
jax: 0.10.0
libtpu: 0.0.40
codegen_flags: <defaults>
</compile_context>

<pallas_src>
import functools

import jax
import jax.numpy as jnp
from jax.experimental import pallas as pl
from jax.experimental.pallas import tpu as pltpu

EPS = 1e-5
ROW_TILE = 512          # rows (N*Ho*Wo) per grid step


# ----------------------------------------------------------------------------
# quantization / folding helpers (plain JAX glue; also used inside the kernel)
# ----------------------------------------------------------------------------
def _round_up(x, m):
    return -(-x // m) * m


def _binarize(x):
    # TODO(synk): exact q.QuantSign source not provided; 1-bit binarization maps
    # x >= 0 -> +1, x < 0 -> -1 (0 -> +1, matching common FracBNN implementations).
    return jnp.where(x >= 0.0, 1.0, -1.0)


def _quant4(x):
    # TODO(synk): exact q.QuantSign(x, 4) not provided; approximated as 4-bit
    # (31-level) uniform quantization of clamp(x, -1, 1).
    return jnp.round(jnp.clip(x, -1.0, 1.0) * 15.0) * (1.0 / 15.0)


def _bn_fold(gamma, beta, mean, var):
    s = gamma / jnp.sqrt(var + EPS)
    return s, beta - mean * s


# ----------------------------------------------------------------------------
# fused Pallas kernel: conv3x3(binary) + BN + PReLU + shortcut + shiftBN,
#                      then pointwise(binary) + BN + PReLU + shortcut + shiftBN
# ----------------------------------------------------------------------------
def _make_fused_kernel(inp, duplicate_channels):
    def kernel(p_ref, sc_ref, w3_ref, w1_ref, c1_ref, c2_ref, o_ref):
        # ---- stage 1: binary 3x3 conv (patches pre-binarized +-1, bf16) ----
        y = jnp.dot(p_ref[...], w3_ref[...], preferred_element_type=jnp.float32)
        s1, b1, a1, ss1, sb1 = (c1_ref[i:i + 1, :] for i in range(5))
        y = y * s1 + b1                                # BatchNorm2d(inp) (|w| folded)
        y = jnp.where(y >= 0.0, y, a1 * y)             # rprelu1 (per-channel PReLU)
        t = (y + sc_ref[...]) * ss1 + sb1              # + shortcut1(quant4(x)); shiftbn1

        # ---- stage 2: binary 1x1 conv on binarize(t), 4-bit shortcut --------
        tb1 = _binarize(t).astype(jnp.bfloat16)        # exact +-1 in bf16
        tb4 = _quant4(t)
        z = jnp.dot(tb1, w1_ref[...], preferred_element_type=jnp.float32)
        s2, b2, a2, ss2, sb2 = (c2_ref[i:i + 1, :] for i in range(5))
        z = z * s2 + b2                                # BatchNorm2d(oup) (|w| folded)
        z = jnp.where(z >= 0.0, z, a2 * z)             # rprelu2
        if duplicate_channels:
            # shortcut2 = cat((tb4, tb4), dim=C), done as two half-width adds
            o_ref[:, :inp] = (z[:, :inp] + tb4) * ss2[:, :inp] + sb2[:, :inp]
            o_ref[:, inp:] = (z[:, inp:] + tb4) * ss2[:, inp:] + sb2[:, inp:]
        else:
            o_ref[...] = (z + tb4) * ss2 + sb2         # shiftbn2
    return kernel


# ----------------------------------------------------------------------------
# glue: im2col, parameter init, full forward
# ----------------------------------------------------------------------------
def _im2col_3x3(x_nhwc, stride):
    # TODO(synk): im2col is still materialized by XLA (in bf16); fusing the halo
    # reads into the Pallas kernel would cut stage-1 HBM reads by another ~9x.
    n, h, w, c = x_nhwc.shape
    xp = jnp.pad(x_nhwc, ((0, 0), (1, 1), (1, 1), (0, 0)))   # conv zero padding
    ho = (h + 2 - 3) // stride + 1
    wo = (w + 2 - 3) // stride + 1
    cols = []
    for kh in range(3):
        for kw in range(3):
            cols.append(xp[:, kh:kh + stride * (ho - 1) + 1:stride,
                           kw:kw + stride * (wo - 1) + 1:stride, :])
    patches = jnp.concatenate(cols, axis=-1)   # (N, Ho, Wo, 9*C), order (kh, kw, cin)
    return patches.reshape(n * ho * wo, 9 * c), ho, wo


def init_params(key, inp, oup):
    ks = jax.random.split(key, 6)

    def bn(k, c):
        k1, k2, k3, k4 = jax.random.split(k, 4)
        return dict(
            gamma=jax.random.uniform(k1, (c,), jnp.float32, 0.5, 1.5),
            beta=0.1 * jax.random.normal(k2, (c,), jnp.float32),
            mean=0.1 * jax.random.normal(k3, (c,), jnp.float32),
            var=jax.random.uniform(k4, (c,), jnp.float32, 0.5, 1.5),
        )

    return dict(
        w3=0.1 * jax.random.normal(ks[0], (inp, inp, 3, 3), jnp.float32),  # OIHW
        bn1=bn(ks[1], inp),
        w1=0.1 * jax.random.normal(ks[2], (oup, inp, 1, 1), jnp.float32),  # OIHW
        bn2=bn(ks[3], oup),
        alpha1=jnp.full((inp,), 0.25, jnp.float32),   # nn.PReLU(inp) default init
        alpha2=jnp.full((oup,), 0.25, jnp.float32),   # nn.PReLU(oup) default init
        sbn1=bn(ks[4], inp),
        sbn2=bn(ks[5], oup),
    )


def building_block_forward(params, x_nchw, stride):
    inp = params['w3'].shape[1]
    oup = params['w1'].shape[0]
    assert oup in (inp, 2 * inp), "shortcut2 requires oup == inp or oup == 2*inp"
    n, c, h, w = x_nchw.shape
    assert c == inp
    x = jnp.transpose(x_nchw, (0, 2, 3, 1)).astype(jnp.float32)   # -> NHWC

    # ---- host-side prep: binarize, im2col (bf16), fold BN / weight scales ----
    xb1 = _binarize(x).astype(jnp.bfloat16)               # exact +-1 in bf16
    patches, ho, wo = _im2col_3x3(xb1, stride)             # (rows, 9*Cin) bf16
    x4 = _quant4(x)
    if stride == 2:
        # shortcut1 = AvgPool2d(kernel_size=2, stride=2) on the 4-bit shortcut
        x4 = x4.reshape(n, ho, 2, wo, 2, inp).mean(axis=(2, 4))
    sc1 = x4.reshape(n * ho * wo, inp)                     # (rows, Cin) f32

    # XNOR binary weights: pure sign(w) in bf16 (exact), |w| mean folded into BN
    # TODO(synk): PGBinaryConv2d precision-gating branch not reproducible
    # without the `q` module; only the binary-weight conv path is implemented.
    w3_scale = jnp.mean(jnp.abs(params['w3']), axis=(1, 2, 3))          # (inp,)
    w3m = jnp.transpose(_binarize(params['w3']), (2, 3, 1, 0)
                        ).reshape(9 * inp, inp).astype(jnp.bfloat16)
    w1_scale = jnp.mean(jnp.abs(params['w1']), axis=(1, 2, 3))          # (oup,)
    w1m = jnp.transpose(_binarize(params['w1']), (2, 3, 1, 0)
                        ).reshape(inp, oup).astype(jnp.bfloat16)

    s1, b1 = _bn_fold(**params['bn1'])
    ss1, sb1 = _bn_fold(**params['sbn1'])
    s2, b2 = _bn_fold(**params['bn2'])
    ss2, sb2 = _bn_fold(**params['sbn2'])
    c1 = jnp.stack([s1 * w3_scale, b1, params['alpha1'], ss1, sb1]
                   ).astype(jnp.float32)                   # (5, inp)
    c2 = jnp.stack([s2 * w1_scale, b2, params['alpha2'], ss2, sb2]
                   ).astype(jnp.float32)                   # (5, oup)

    rows = n * ho * wo
    row_tile = min(ROW_TILE, _round_up(rows, 16))
    grid = (pl.cdiv(rows, row_tile),)

    # VMEM budget: double-buffered row streams + resident weights, with headroom,
    # clamped to the v7x physical 64 MiB per-core VMEM.
    # TODO(synk): constant-index weight/BN blocks still get default 2 buffers;
    # pl.Buffered(1) would trim VMEM further for very large Cin on v7x.
    est = 2 * (row_tile * 9 * inp * 2 + row_tile * inp * 4 + row_tile * oup * 4
               + 9 * inp * inp * 2 + inp * oup * 2 + 5 * (inp + oup) * 4)
    vmem_limit = int(min(64 * 2 ** 20, max(32 * 2 ** 20, 2 * est)))

    out = pl.pallas_call(
        _make_fused_kernel(inp, oup == 2 * inp),
        out_shape=jax.ShapeDtypeStruct((rows, oup), jnp.float32),
        grid=grid,
        in_specs=[
            pl.BlockSpec((row_tile, 9 * inp), lambda i: (i, 0)),   # bin patches (bf16)
            pl.BlockSpec((row_tile, inp), lambda i: (i, 0)),       # 4-bit shortcut (f32)
            pl.BlockSpec((9 * inp, inp), lambda i: (0, 0)),        # sign(w3) (bf16)
            pl.BlockSpec((inp, oup), lambda i: (0, 0)),            # sign(w1) (bf16)
            pl.BlockSpec((5, inp), lambda i: (0, 0)),              # folded BN/PReLU, stage 1
            pl.BlockSpec((5, oup), lambda i: (0, 0)),              # folded BN/PReLU, stage 2
        ],
        out_specs=pl.BlockSpec((row_tile, oup), lambda i: (i, 0)),
        compiler_params=pltpu.CompilerParams(
            dimension_semantics=("parallel",),
            vmem_limit_bytes=vmem_limit),
    )(patches, sc1, w3m, w1m, c1, c2)

    out = out.reshape(n, ho, wo, oup)
    return jnp.transpose(out, (0, 3, 1, 2))   # -> NCHW


if __name__ == "__main__":
    key = jax.random.PRNGKey(0)
    inp, oup, stride = 4, 8, 2          # exercises both shortcuts (avgpool + channel dup)
    N, H, W = 2, 16, 16

    kp, kx = jax.random.split(key)
    params = init_params(kp, inp, oup)
    x = jax.random.normal(kx, (N, inp, H, W), jnp.float32)

    fwd = jax.jit(functools.partial(building_block_forward, stride=stride))
    out = fwd(params, x)
    jax.block_until_ready(out)
    assert out.shape == (N, oup, H // stride, W // stride)
    assert bool(jnp.all(jnp.isfinite(out)))
    print("KERNEL_OK")
</pallas_src>

<mosaic_0001>
module attributes {stable_mosaic.version = 11 : i64} {
  func.func @kernel(%arg0: i32, %arg1: memref<128x36xbf16, #tpu.memory_space<vmem>>, %arg2: memref<128x4xf32, #tpu.memory_space<vmem>>, %arg3: memref<36x4xbf16, #tpu.memory_space<vmem>>, %arg4: memref<4x8xbf16, #tpu.memory_space<vmem>>, %arg5: memref<5x4xf32, #tpu.memory_space<vmem>>, %arg6: memref<5x8xf32, #tpu.memory_space<vmem>>, %arg7: memref<128x8xf32, #tpu.memory_space<vmem>>) attributes {dimension_semantics = [#tpu.dimension_semantics<parallel>], iteration_bounds = array<i64: 1>, scalar_prefetch = 0 : i64, scratch_operands = 0 : i64, tpu.core_type = #tpu.core_type<tc>, window_params = [{transform_indices = @transform_0, window_bounds = array<i64: 128, 36>}, {transform_indices = @transform_1, window_bounds = array<i64: 128, 4>}, {pipeline_mode = #tpu.pipeline_mode<synchronous>, transform_indices = @transform_2, window_bounds = array<i64: 36, 4>}, {pipeline_mode = #tpu.pipeline_mode<synchronous>, transform_indices = @transform_3, window_bounds = array<i64: 4, 8>}, {pipeline_mode = #tpu.pipeline_mode<synchronous>, transform_indices = @transform_4, window_bounds = array<i64: 5, 4>}, {pipeline_mode = #tpu.pipeline_mode<synchronous>, transform_indices = @transform_5, window_bounds = array<i64: 5, 8>}, {transform_indices = @transform_6, window_bounds = array<i64: 128, 8>}]} {
    %c0 = arith.constant 0 : index
    %c0_0 = arith.constant 0 : index
    %0 = vector.load %arg1[%c0, %c0_0] : memref<128x36xbf16, #tpu.memory_space<vmem>>, vector<128x36xbf16>
    %c0_1 = arith.constant 0 : index
    %c0_2 = arith.constant 0 : index
    %1 = vector.load %arg3[%c0_1, %c0_2] : memref<36x4xbf16, #tpu.memory_space<vmem>>, vector<36x4xbf16>
    %cst = arith.constant dense<0.000000e+00> : vector<128x4xf32>
    %2 = tpu.matmul %0, %1, %cst {dimension_numbers = #tpu.dot_dimension_numbers<[1], [0], [0], [1], [0, 0, 1, 1], [], []>} : vector<128x36xbf16>, vector<36x4xbf16>, vector<128x4xf32> -> vector<128x4xf32>
    %c0_3 = arith.constant 0 : index
    %c0_4 = arith.constant 0 : index
    %3 = vector.load %arg5[%c0_3, %c0_4] : memref<5x4xf32, #tpu.memory_space<vmem>>, vector<1x4xf32>
    %c1 = arith.constant 1 : index
    %c0_5 = arith.constant 0 : index
    %4 = vector.load %arg5[%c1, %c0_5] : memref<5x4xf32, #tpu.memory_space<vmem>>, vector<1x4xf32>
    %c2 = arith.constant 2 : index
    %c0_6 = arith.constant 0 : index
    %5 = vector.load %arg5[%c2, %c0_6] : memref<5x4xf32, #tpu.memory_space<vmem>>, vector<1x4xf32>
    %c3 = arith.constant 3 : index
    %c0_7 = arith.constant 0 : index
    %6 = vector.load %arg5[%c3, %c0_7] : memref<5x4xf32, #tpu.memory_space<vmem>>, vector<1x4xf32>
    %c4 = arith.constant 4 : index
    %c0_8 = arith.constant 0 : index
    %7 = vector.load %arg5[%c4, %c0_8] : memref<5x4xf32, #tpu.memory_space<vmem>>, vector<1x4xf32>
    %8 = vector.broadcast %3 : vector<1x4xf32> to vector<128x4xf32>
    %9 = arith.mulf %2, %8 : vector<128x4xf32>
    %10 = vector.broadcast %4 : vector<1x4xf32> to vector<128x4xf32>
    %11 = arith.addf %9, %10 : vector<128x4xf32>
    %cst_9 = arith.constant 0.000000e+00 : f32
    %12 = vector.broadcast %cst_9 : f32 to vector<128x4xf32>
    %13 = arith.cmpf oge, %11, %12 : vector<128x4xf32>
    %14 = vector.broadcast %5 : vector<1x4xf32> to vector<128x4xf32>
    %15 = arith.mulf %14, %11 : vector<128x4xf32>
    %16 = arith.select %13, %11, %15 : vector<128x4xi1>, vector<128x4xf32>
    %c0_10 = arith.constant 0 : index
    %c0_11 = arith.constant 0 : index
    %17 = vector.load %arg2[%c0_10, %c0_11] : memref<128x4xf32, #tpu.memory_space<vmem>>, vector<128x4xf32>
    %18 = arith.addf %16, %17 : vector<128x4xf32>
    %19 = vector.broadcast %6 : vector<1x4xf32> to vector<128x4xf32>
    %20 = arith.mulf %18, %19 : vector<128x4xf32>
    %21 = vector.broadcast %7 : vector<1x4xf32> to vector<128x4xf32>
    %22 = arith.addf %20, %21 : vector<128x4xf32>
    %cst_12 = arith.constant 0.000000e+00 : f32
    %23 = vector.broadcast %cst_12 : f32 to vector<128x4xf32>
    %24 = arith.cmpf oge, %22, %23 : vector<128x4xf32>
    %cst_13 = arith.constant 1.000000e+00 : f32
    %cst_14 = arith.constant -1.000000e+00 : f32
    %25 = vector.broadcast %cst_13 : f32 to vector<128x4xf32>
    %26 = vector.broadcast %cst_14 : f32 to vector<128x4xf32>
    %27 = arith.select %24, %25, %26 : vector<128x4xi1>, vector<128x4xf32>
    %28 = arith.truncf %27 : vector<128x4xf32> to vector<128x4xbf16>
    %cst_15 = arith.constant -1.000000e+00 : f32
    %cst_16 = arith.constant 1.000000e+00 : f32
    %29 = vector.broadcast %cst_15 : f32 to vector<128x4xf32>
    %30 = arith.maximumf %29, %22 : vector<128x4xf32>
    %31 = vector.broadcast %cst_16 : f32 to vector<128x4xf32>
    %32 = arith.minimumf %31, %30 : vector<128x4xf32>
    %cst_17 = arith.constant 1.500000e+01 : f32
    %33 = vector.broadcast %cst_17 : f32 to vector<128x4xf32>
    %34 = arith.mulf %32, %33 : vector<128x4xf32>
    %35 = math.roundeven %34 : vector<128x4xf32>
    %cst_18 = arith.constant 0.0666666701 : f32
    %36 = vector.broadcast %cst_18 : f32 to vector<128x4xf32>
    %37 = arith.mulf %35, %36 : vector<128x4xf32>
    %c0_19 = arith.constant 0 : index
    %c0_20 = arith.constant 0 : index
    %38 = vector.load %arg4[%c0_19, %c0_20] : memref<4x8xbf16, #tpu.memory_space<vmem>>, vector<4x8xbf16>
    %cst_21 = arith.constant dense<0.000000e+00> : vector<128x8xf32>
    %39 = tpu.matmul %28, %38, %cst_21 {dimension_numbers = #tpu.dot_dimension_numbers<[1], [0], [0], [1], [0, 0, 1, 1], [], []>} : vector<128x4xbf16>, vector<4x8xbf16>, vector<128x8xf32> -> vector<128x8xf32>
    %c0_22 = arith.constant 0 : index
    %c0_23 = arith.constant 0 : index
    %40 = vector.load %arg6[%c0_22, %c0_23] : memref<5x8xf32, #tpu.memory_space<vmem>>, vector<1x8xf32>
    %c1_24 = arith.constant 1 : index
    %c0_25 = arith.constant 0 : index
    %41 = vector.load %arg6[%c1_24, %c0_25] : memref<5x8xf32, #tpu.memory_space<vmem>>, vector<1x8xf32>
    %c2_26 = arith.constant 2 : index
    %c0_27 = arith.constant 0 : index
    %42 = vector.load %arg6[%c2_26, %c0_27] : memref<5x8xf32, #tpu.memory_space<vmem>>, vector<1x8xf32>
    %c3_28 = arith.constant 3 : index
    %c0_29 = arith.constant 0 : index
    %43 = vector.load %arg6[%c3_28, %c0_29] : memref<5x8xf32, #tpu.memory_space<vmem>>, vector<1x8xf32>
    %c4_30 = arith.constant 4 : index
    %c0_31 = arith.constant 0 : index
    %44 = vector.load %arg6[%c4_30, %c0_31] : memref<5x8xf32, #tpu.memory_space<vmem>>, vector<1x8xf32>
    %45 = vector.broadcast %40 : vector<1x8xf32> to vector<128x8xf32>
    %46 = arith.mulf %39, %45 : vector<128x8xf32>
    %47 = vector.broadcast %41 : vector<1x8xf32> to vector<128x8xf32>
    %48 = arith.addf %46, %47 : vector<128x8xf32>
    %cst_32 = arith.constant 0.000000e+00 : f32
    %49 = vector.broadcast %cst_32 : f32 to vector<128x8xf32>
    %50 = arith.cmpf oge, %48, %49 : vector<128x8xf32>
    %51 = vector.broadcast %42 : vector<1x8xf32> to vector<128x8xf32>
    %52 = arith.mulf %51, %48 : vector<128x8xf32>
    %53 = arith.select %50, %48, %52 : vector<128x8xi1>, vector<128x8xf32>
    %54 = vector.extract_strided_slice %53 {offsets = [0, 0], sizes = [128, 4], strides = [1, 1]} : vector<128x8xf32> to vector<128x4xf32>
    %55 = arith.addf %54, %37 : vector<128x4xf32>
    %56 = vector.extract_strided_slice %43 {offsets = [0, 0], sizes = [1, 4], strides = [1, 1]} : vector<1x8xf32> to vector<1x4xf32>
    %57 = vector.broadcast %56 : vector<1x4xf32> to vector<128x4xf32>
    %58 = arith.mulf %55, %57 : vector<128x4xf32>
    %59 = vector.extract_strided_slice %44 {offsets = [0, 0], sizes = [1, 4], strides = [1, 1]} : vector<1x8xf32> to vector<1x4xf32>
    %60 = vector.broadcast %59 : vector<1x4xf32> to vector<128x4xf32>
    %61 = arith.addf %58, %60 : vector<128x4xf32>
    %c0_33 = arith.constant 0 : index
    %c0_34 = arith.constant 0 : index
    %62 = vector.load %arg7[%c0_33, %c0_34] : memref<128x8xf32, #tpu.memory_space<vmem>>, vector<128x4xf32>
    tpu.vector_store %arg7[%c0_33, %c0_34], %61 {strides = array<i32>} : memref<128x8xf32, #tpu.memory_space<vmem>>, vector<128x4xf32>,
    %63 = vector.extract_strided_slice %53 {offsets = [0, 4], sizes = [128, 4], strides = [1, 1]} : vector<128x8xf32> to vector<128x4xf32>
    %64 = arith.addf %63, %37 : vector<128x4xf32>
    %65 = vector.extract_strided_slice %43 {offsets = [0, 4], sizes = [1, 4], strides = [1, 1]} : vector<1x8xf32> to vector<1x4xf32>
    %66 = vector.broadcast %65 : vector<1x4xf32> to vector<128x4xf32>
    %67 = arith.mulf %64, %66 : vector<128x4xf32>
    %68 = vector.extract_strided_slice %44 {offsets = [0, 4], sizes = [1, 4], strides = [1, 1]} : vector<1x8xf32> to vector<1x4xf32>
    %69 = vector.broadcast %68 : vector<1x4xf32> to vector<128x4xf32>
    %70 = arith.addf %67, %69 : vector<128x4xf32>
    %c0_35 = arith.constant 0 : index
    %c4_36 = arith.constant 4 : index
    %71 = vector.load %arg7[%c0_35, %c4_36] : memref<128x8xf32, #tpu.memory_space<vmem>>, vector<128x4xf32>
    tpu.vector_store %arg7[%c0_35, %c4_36], %70 {strides = array<i32>} : memref<128x8xf32, #tpu.memory_space<vmem>>, vector<128x4xf32>,
    return
  }
  func.func @transform_0(%arg0: i32) -> (i32, i32) {
    %c0_i32 = arith.constant 0 : i32
    %c0_i32_0 = arith.constant 0 : i32
    return %arg0, %c0_i32 : i32, i32
  }
  func.func @transform_1(%arg0: i32) -> (i32, i32) {
    %c0_i32 = arith.constant 0 : i32
    %c0_i32_0 = arith.constant 0 : i32
    return %arg0, %c0_i32 : i32, i32
  }
  func.func @transform_2(%arg0: i32) -> (i32, i32) {
    %c0_i32 = arith.constant 0 : i32
    %c0_i32_0 = arith.constant 0 : i32
    %c0_i32_1 = arith.constant 0 : i32
    return %c0_i32, %c0_i32_0 : i32, i32
  }
  func.func @transform_3(%arg0: i32) -> (i32, i32) {
    %c0_i32 = arith.constant 0 : i32
    %c0_i32_0 = arith.constant 0 : i32
    %c0_i32_1 = arith.constant 0 : i32
    return %c0_i32, %c0_i32_0 : i32, i32
  }
  func.func @transform_4(%arg0: i32) -> (i32, i32) {
    %c0_i32 = arith.constant 0 : i32
    %c0_i32_0 = arith.constant 0 : i32
    %c0_i32_1 = arith.constant 0 : i32
    return %c0_i32, %c0_i32_0 : i32, i32
  }
  func.func @transform_5(%arg0: i32) -> (i32, i32) {
    %c0_i32 = arith.constant 0 : i32
    %c0_i32_0 = arith.constant 0 : i32
    %c0_i32_1 = arith.constant 0 : i32
    return %c0_i32, %c0_i32_0 : i32, i32
  }
  func.func @transform_6(%arg0: i32) -> (i32, i32) {
    %c0_i32 = arith.constant 0 : i32
    %c0_i32_0 = arith.constant 0 : i32
    return %arg0, %c0_i32 : i32, i32
  }
}

</mosaic_0001>

<llo_original>
// kernel: building_block_forward.1
$region0: #{building_block_forward.1}
  #allocation0 [shape = 'u32[]', space=smem, size = 0x4, offset = 0x4, fixed_abs, tag = 'smem constant byte address 0x4 - core index']
  #allocation1 [shape = 'u32[144,128]{1,0:T(1,128)}', space=vmem, size = 0x12000, scoped, tag = 'internal scratch']
  %s0 = inlined_call_operand.vmem [shape: bf16[128,36], index: 0, kind: input, shape index: {}]
  %s1 = inlined_call_operand.vmem [shape: f32[128,4], index: 1, kind: input, shape index: {}]
  %s2 = inlined_call_operand.vmem [shape: bf16[36,4], index: 2, kind: input, shape index: {}]
  %s3 = inlined_call_operand.vmem [shape: bf16[4,8], index: 3, kind: input, shape index: {}]
  %s4 = inlined_call_operand.vmem [shape: f32[5,4], index: 4, kind: input, shape index: {}]
  %s5 = inlined_call_operand.vmem [shape: f32[5,8], index: 5, kind: input, shape index: {}]
  %s6 = inlined_call_operand.vmem [shape: f32[128,8], index: 6, kind: output, shape index: {}]
  %s7 = sld [smem:[#allocation0]]
  $region34: #{building_block_forward.1} parent=0
    _
  %s9 = ssub.s32 1, %s7
  %s10 = scalar_select 0, %s9, %s7
  // Predicated region
  $region2: #{building_block_forward.1} parent=0 // pred_check
    _
  $region3: #{building_block_forward.1} parent=0 // pred_check_branch
    %12 = sbr.rel (0) target = $region5
  $region4: #{building_block_forward.1} parent=0 // pred_region
    _
  $region5: #{building_block_forward.1} parent=0 // pred_fallthru
    _
  // Predicated region
  $region6: #{building_block_forward.1} parent=0 // pred_check
    _
  $region7: #{building_block_forward.1} parent=0 // pred_check_branch
    %14 = sbr.rel (0) target = $region9
  $region8: #{building_block_forward.1} parent=0 // pred_region
    _
  $region9: #{building_block_forward.1} parent=0 // pred_fallthru
    _
  // Predicated region
  $region10: #{building_block_forward.1} parent=0 // pred_check
    _
  $region11: #{building_block_forward.1} parent=0 // pred_check_branch
    %16 = sbr.rel (0) target = $region13
  $region12: #{building_block_forward.1} parent=0 // pred_region
    _
  $region13: #{building_block_forward.1} parent=0 // pred_fallthru
    _
  // Predicated region
  $region14: #{building_block_forward.1} parent=0 // pred_check
    _
  $region15: #{building_block_forward.1} parent=0 // pred_check_branch
    %18 = sbr.rel (0) target = $region17
  $region16: #{building_block_forward.1} parent=0 // pred_region
    _
  $region17: #{building_block_forward.1} parent=0 // pred_fallthru
    _
  // Predicated region
  $region18: #{building_block_forward.1} parent=0 // pred_check
    _
  $region19: #{building_block_forward.1} parent=0 // pred_check_branch
    %20 = sbr.rel (0) target = $region21
  $region20: #{building_block_forward.1} parent=0 // pred_region
    _
  $region21: #{building_block_forward.1} parent=0 // pred_fallthru
    _
  // Predicated region
  $region22: #{building_block_forward.1} parent=0 // pred_check
    _
  $region23: #{building_block_forward.1} parent=0 // pred_check_branch
    %22 = sbr.rel (0) target = $region25
  $region24: #{building_block_forward.1} parent=0 // pred_region
    _
  $region25: #{building_block_forward.1} parent=0 // pred_fallthru
    _
  %v24 = vld [vmem:[%s0] sm:$0xf]
  %v25 = vld [vmem:[%s0 + $0x4] sm:$0xf]
  %v26 = vld [vmem:[%s0 + $0x8] sm:$0xf]
  %v27 = vld [vmem:[%s0 + $0xc] sm:$0xf]
  %v28 = vld [vmem:[%s0 + $0x10] sm:$0xf]
  %v29 = vld [vmem:[%s0 + $0x14] sm:$0xf]
  %v30 = vld [vmem:[%s0 + $0x18] sm:$0xf]
  %v31 = vld [vmem:[%s0 + $0x1c] sm:$0xf]
  %v32 = vld [vmem:[%s0 + $0x20] sm:$0xf]
  %v33 = vld [vmem:[%s0 + $0x24] sm:$0xf]
  %v34 = vld [vmem:[%s0 + $0x28] sm:$0xf]
  %v35 = vld [vmem:[%s0 + $0x2c] sm:$0xf]
  %v36 = vld [vmem:[%s0 + $0x30] sm:$0xf]
  %v37 = vld [vmem:[%s0 + $0x34] sm:$0xf]
  %v38 = vld [vmem:[%s0 + $0x38] sm:$0xf]
  %v39 = vld [vmem:[%s0 + $0x3c] sm:$0xf]
  %v40 = vld [vmem:[%s2] sm:$0xf]
  %v41 = vld [vmem:[%s2 + $0x4] sm:$0xf]
  %v42 = vld [vmem:[%s2 + $0x8] sm:$0xf]
  %v43 = vld [vmem:[%s2 + $0xc] sm:$0xf]
  %v44 = vld [vmem:[%s2 + $0x10] sm:$0x3]
  %v61 = vunpack.c.l.b16 %v24
  %v62 = vunpack.c.l.b16 %v25
  %v63 = vunpack.c.l.b16 %v26
  %v64 = vunpack.c.l.b16 %v27
  %v65 = vunpack.c.l.b16 %v28
  %v66 = vunpack.c.l.b16 %v29
  %v67 = vunpack.c.l.b16 %v30
  %v68 = vunpack.c.l.b16 %v31
  %v69 = vunpack.c.l.b16 %v32
  %v70 = vunpack.c.l.b16 %v33
  %v71 = vunpack.c.l.b16 %v34
  %v72 = vunpack.c.l.b16 %v35
  %v73 = vunpack.c.l.b16 %v36
  %v74 = vunpack.c.l.b16 %v37
  %v75 = vunpack.c.l.b16 %v38
  %v76 = vunpack.c.l.b16 %v39
  %v77 = vpack.c.b16 %v62, %v61
  %v78 = vpack.c.b16 %v64, %v63
  %v79 = vpack.c.b16 %v66, %v65
  %v80 = vpack.c.b16 %v68, %v67
  %v81 = vpack.c.b16 %v70, %v69
  %v82 = vpack.c.b16 %v72, %v71
  %v83 = vpack.c.b16 %v74, %v73
  %v84 = vpack.c.b16 %v76, %v75
  %v90 = vunpack.c.l.b16 %v40
  %v91 = vunpack.c.l.b16 %v41
  %v92 = vunpack.c.l.b16 %v42
  %v93 = vunpack.c.l.b16 %v43
  %v94 = vunpack.c.l.b16 %v44
  %v95 = vpack.c.b16 %v91, %v90
  %v96 = vpack.c.b16 %v93, %v92
  %v97 = vpack.c.b16 %v94, %v94
  %vm100 = vcmask 293888
  %v102 = vsel %vm100, %v77, 0
  %v105 = vsel %vm100, %v78, 0
  %v108 = vsel %vm100, %v79, 0
  %v111 = vsel %vm100, %v80, 0
  %v114 = vsel %vm100, %v81, 0
  %v117 = vsel %vm100, %v82, 0
  %v120 = vsel %vm100, %v83, 0
  %v123 = vsel %vm100, %v84, 0
  %vm125 = vcmask 1041408
  %v127 = vsel %vm125, %v97, 0
  %129 = vmatprep.subr.bf16.mxu0 0
  %130 = vmatpush1.bf16.msra.mxu0 %v95
  %131 = vmatprep.subr.bf16.mxu0 0
  %132 = vmatpush1.bf16.msra.mxu0 %v96
  %133 = vmatprep.subr.bf16.mxu0 0
  %134 = vmatpush1.bf16.msra.mxu0 %v127
  %135 = vmatprep.subr.bf16.mxu0 0
  %136 = vmatpush1.bf16.msra.mxu0 0
  %137 = vmatprep.subr.bf16.mxu0 0
  %138 = vmatpush1.bf16.msra.mxu0 0
  %139 = vmatprep.subr.bf16.mxu0 0
  %140 = vmatpush1.bf16.msra.mxu0 0
  %141 = vmatprep.subr.bf16.mxu0 0
  %142 = vmatpush1.bf16.msra.mxu0 0
  %143 = vmatprep.subr.bf16.mxu0 0
  %144 = vmatpush1.bf16.msra.mxu0 0
  %145 = vmatprep.subr.bf16.mxu0 0
  %146 = vmatpush1.bf16.msra.mxu0 0
  %147 = vmatprep.subr.bf16.mxu0 0
  %148 = vmatpush1.bf16.msra.mxu0 0
  %149 = vmatprep.subr.bf16.mxu0 0
  %150 = vmatpush1.bf16.msra.mxu0 0
  %151 = vmatprep.subr.bf16.mxu0 0
  %152 = vmatpush1.bf16.msra.mxu0 0
  %153 = vmatprep.subr.bf16.mxu0 0
  %154 = vmatpush1.bf16.msra.mxu0 0
  %155 = vmatprep.subr.bf16.mxu0 0
  %156 = vmatpush1.bf16.msra.mxu0 0
  %157 = vmatprep.subr.bf16.mxu0 0
  %158 = vmatpush1.bf16.msra.mxu0 0
  %159 = vmatprep.subr.bf16.mxu0 0
  %160 = vmatpush1.bf16.msra.mxu0 0
  %161 = vmatprep.mubr.bf16.mxu0 0
  %162 = vmatmul.mubr.bf16.gmra.mrb[0].mxu0 %v102
  %v163 = vpop.f32.mrb[0].mxu0
  %v164 = vadd.f32 0.0, %v163
  %v165 = vpop.f32.mrb[0].mxu0
  %v166 = vpop.f32.mrb[0].mxu0
  %v167 = vadd.f32 0.0, %v166
  %v168 = vpop.f32.mrb[0].mxu0
  %169 = vmatprep.mubr.bf16.mxu0 0
  %170 = vmatmul.mubr.bf16.gmra.mrb[0].mxu0 %v105
  %v171 = vpop.f32.mrb[0].mxu0
  %v172 = vadd.f32 0.0, %v171
  %v173 = vpop.f32.mrb[0].mxu0
  %v174 = vpop.f32.mrb[0].mxu0
  %v175 = vadd.f32 0.0, %v174
  %v176 = vpop.f32.mrb[0].mxu0
  %177 = vmatprep.mubr.bf16.mxu0 0
  %178 = vmatmul.mubr.bf16.gmra.mrb[0].mxu0 %v108
  %v179 = vpop.f32.mrb[0].mxu0
  %v180 = vadd.f32 0.0, %v179
  %v181 = vpop.f32.mrb[0].mxu0
  %v182 = vpop.f32.mrb[0].mxu0
  %v183 = vadd.f32 0.0, %v182
  %v184 = vpop.f32.mrb[0].mxu0
  %185 = vmatprep.mubr.bf16.mxu0 0
  %186 = vmatmul.mubr.bf16.gmra.mrb[0].mxu0 %v111
  %v187 = vpop.f32.mrb[0].mxu0
  %v188 = vadd.f32 0.0, %v187
  %v189 = vpop.f32.mrb[0].mxu0
  %v190 = vpop.f32.mrb[0].mxu0
  %v191 = vadd.f32 0.0, %v190
  %v192 = vpop.f32.mrb[0].mxu0
  %193 = vmatprep.mubr.bf16.mxu0 0
  %194 = vmatmul.mubr.bf16.gmra.mrb[0].mxu0 %v114
  %v195 = vpop.f32.mrb[0].mxu0
  %v196 = vadd.f32 0.0, %v195
  %v197 = vpop.f32.mrb[0].mxu0
  %v198 = vpop.f32.mrb[0].mxu0
  %v199 = vadd.f32 0.0, %v198
  %v200 = vpop.f32.mrb[0].mxu0
  %201 = vmatprep.mubr.bf16.mxu0 0
  %202 = vmatmul.mubr.bf16.gmra.mrb[0].mxu0 %v117
  %v203 = vpop.f32.mrb[0].mxu0
  %v204 = vadd.f32 0.0, %v203
  %v205 = vpop.f32.mrb[0].mxu0
  %v206 = vpop.f32.mrb[0].mxu0
  %v207 = vadd.f32 0.0, %v206
  %v208 = vpop.f32.mrb[0].mxu0
  %209 = vmatprep.mubr.bf16.mxu0 0
  %210 = vmatmul.mubr.bf16.gmra.mrb[0].mxu0 %v120
  %v211 = vpop.f32.mrb[0].mxu0
  %v212 = vadd.f32 0.0, %v211
  %v213 = vpop.f32.mrb[0].mxu0
  %v214 = vpop.f32.mrb[0].mxu0
  %v215 = vadd.f32 0.0, %v214
  %v216 = vpop.f32.mrb[0].mxu0
  %217 = vmatprep.mubr.bf16.mxu0 0
  %218 = vmatmul.mubr.bf16.gmra.mrb[0].mxu0 %v123
  %v219 = vpop.f32.mrb[0].mxu0
  %v220 = vadd.f32 0.0, %v219
  %v221 = vpop.f32.mrb[0].mxu0
  %v222 = vpop.f32.mrb[0].mxu0
  %v223 = vadd.f32 0.0, %v222
  %v224 = vpop.f32.mrb[0].mxu0
  %225 = vdwg.mxu0
  %v226 = vld [vmem:[%s4] sm:$0x1]
  %v227 = vld [vmem:[%s4 + $0x1] sm:$0x1]
  %v228 = vld [vmem:[%s4 + $0x2] sm:$0x1]
  %v229 = vld [vmem:[%s4 + $0x3] sm:$0x1]
  %v230 = vld [vmem:[%s4 + $0x4] sm:$0x1]
  %v231 = vlaneseq
  %v232 = vshrl.u32 %v231, 7
  %v233 = vsub.s32 0, %v232
  %v234 = vrot.slane %v226, %v233
  %v235 = vmul.f32 %v164, %v234
  %v236 = vmul.f32 %v167, %v234
  %v237 = vmul.f32 %v172, %v234
  %v238 = vmul.f32 %v175, %v234
  %v239 = vmul.f32 %v180, %v234
  %v240 = vmul.f32 %v183, %v234
  %v241 = vmul.f32 %v188, %v234
  %v242 = vmul.f32 %v191, %v234
  %v243 = vmul.f32 %v196, %v234
  %v244 = vmul.f32 %v199, %v234
  %v245 = vmul.f32 %v204, %v234
  %v246 = vmul.f32 %v207, %v234
  %v247 = vmul.f32 %v212, %v234
  %v248 = vmul.f32 %v215, %v234
  %v249 = vmul.f32 %v220, %v234
  %v250 = vmul.f32 %v223, %v234
  %v251 = vlaneseq
  %v252 = vshrl.u32 %v251, 7
  %v253 = vsub.s32 0, %v252
  %v254 = vrot.slane %v227, %v253
  %v255 = vadd.f32 %v235, %v254
  %v256 = vadd.f32 %v236, %v254
  %v257 = vadd.f32 %v237, %v254
  %v258 = vadd.f32 %v238, %v254
  %v259 = vadd.f32 %v239, %v254
  %v260 = vadd.f32 %v240, %v254
  %v261 = vadd.f32 %v241, %v254
  %v262 = vadd.f32 %v242, %v254
  %v263 = vadd.f32 %v243, %v254
  %v264 = vadd.f32 %v244, %v254
  %v265 = vadd.f32 %v245, %v254
  %v266 = vadd.f32 %v246, %v254
  %v267 = vadd.f32 %v247, %v254
  %v268 = vadd.f32 %v248, %v254
  %v269 = vadd.f32 %v249, %v254
  %v270 = vadd.f32 %v250, %v254
  %vm271 = vcmp.ge.f32.partialorder %v255, 0.0
  %vm272 = vcmp.ge.f32.partialorder %v256, 0.0
  %vm273 = vcmp.ge.f32.partialorder %v257, 0.0
  %vm274 = vcmp.ge.f32.partialorder %v258, 0.0
  %vm275 = vcmp.ge.f32.partialorder %v259, 0.0
  %vm276 = vcmp.ge.f32.partialorder %v260, 0.0
  %vm277 = vcmp.ge.f32.partialorder %v261, 0.0
  %vm278 = vcmp.ge.f32.partialorder %v262, 0.0
  %vm279 = vcmp.ge.f32.partialorder %v263, 0.0
  %vm280 = vcmp.ge.f32.partialorder %v264, 0.0
  %vm281 = vcmp.ge.f32.partialorder %v265, 0.0
  %vm282 = vcmp.ge.f32.partialorder %v266, 0.0
  %vm283 = vcmp.ge.f32.partialorder %v267, 0.0
  %vm284 = vcmp.ge.f32.partialorder %v268, 0.0
  %vm285 = vcmp.ge.f32.partialorder %v269, 0.0
  %vm286 = vcmp.ge.f32.partialorder %v270, 0.0
  %v287 = vlaneseq
  %v288 = vshrl.u32 %v287, 7
  %v289 = vsub.s32 0, %v288
  %v290 = vrot.slane %v228, %v289
  %v291 = vmul.f32 %v290, %v255
  %v292 = vmul.f32 %v290, %v256
  %v293 = vmul.f32 %v290, %v257
  %v294 = vmul.f32 %v290, %v258
  %v295 = vmul.f32 %v290, %v259
  %v296 = vmul.f32 %v290, %v260
  %v297 = vmul.f32 %v290, %v261
  %v298 = vmul.f32 %v290, %v262
  %v299 = vmul.f32 %v290, %v263
  %v300 = vmul.f32 %v290, %v264
  %v301 = vmul.f32 %v290, %v265
  %v302 = vmul.f32 %v290, %v266
  %v303 = vmul.f32 %v290, %v267
  %v304 = vmul.f32 %v290, %v268
  %v305 = vmul.f32 %v290, %v269
  %v306 = vmul.f32 %v290, %v270
  %v307 = vsel %vm271, %v255, %v291
  %v308 = vsel %vm272, %v256, %v292
  %v309 = vsel %vm273, %v257, %v293
  %v310 = vsel %vm274, %v258, %v294
  %v311 = vsel %vm275, %v259, %v295
  %v312 = vsel %vm276, %v260, %v296
  %v313 = vsel %vm277, %v261, %v297
  %v314 = vsel %vm278, %v262, %v298
  %v315 = vsel %vm279, %v263, %v299
  %v316 = vsel %vm280, %v264, %v300
  %v317 = vsel %vm281, %v265, %v301
  %v318 = vsel %vm282, %v266, %v302
  %v319 = vsel %vm283, %v267, %v303
  %v320 = vsel %vm284, %v268, %v304
  %v321 = vsel %vm285, %v269, %v305
  %v322 = vsel %vm286, %v270, %v306
  %v323 = vld [vmem:[%s1] sm:$0xff]
  %v324 = vld [vmem:[%s1 + $0x8] sm:$0xff]
  %v325 = vld [vmem:[%s1 + $0x10] sm:$0xff]
  %v326 = vld [vmem:[%s1 + $0x18] sm:$0xff]
  %v327 = vld [vmem:[%s1 + $0x20] sm:$0xff]
  %v328 = vld [vmem:[%s1 + $0x28] sm:$0xff]
  %v329 = vld [vmem:[%s1 + $0x30] sm:$0xff]
  %v330 = vld [vmem:[%s1 + $0x38] sm:$0xff]
  %v331 = vld [vmem:[%s1 + $0x40] sm:$0xff]
  %v332 = vld [vmem:[%s1 + $0x48] sm:$0xff]
  %v333 = vld [vmem:[%s1 + $0x50] sm:$0xff]
  %v334 = vld [vmem:[%s1 + $0x58] sm:$0xff]
  %v335 = vld [vmem:[%s1 + $0x60] sm:$0xff]
  %v336 = vld [vmem:[%s1 + $0x68] sm:$0xff]
  %v337 = vld [vmem:[%s1 + $0x70] sm:$0xff]
  %v338 = vld [vmem:[%s1 + $0x78] sm:$0xff]
  %v339 = vadd.f32 %v307, %v323
  %v340 = vadd.f32 %v308, %v324
  %v341 = vadd.f32 %v309, %v325
  %v342 = vadd.f32 %v310, %v326
  %v343 = vadd.f32 %v311, %v327
  %v344 = vadd.f32 %v312, %v328
  %v345 = vadd.f32 %v313, %v329
  %v346 = vadd.f32 %v314, %v330
  %v347 = vadd.f32 %v315, %v331
  %v348 = vadd.f32 %v316, %v332
  %v349 = vadd.f32 %v317, %v333
  %v350 = vadd.f32 %v318, %v334
  %v351 = vadd.f32 %v319, %v335
  %v352 = vadd.f32 %v320, %v336
  %v353 = vadd.f32 %v321, %v337
  %v354 = vadd.f32 %v322, %v338
  %v355 = vlaneseq
  %v356 = vshrl.u32 %v355, 7
  %v357 = vsub.s32 0, %v356
  %v358 = vrot.slane %v229, %v357
  %v359 = vmul.f32 %v339, %v358
  %v360 = vmul.f32 %v340, %v358
  %v361 = vmul.f32 %v341, %v358
  %v362 = vmul.f32 %v342, %v358
  %v363 = vmul.f32 %v343, %v358
  %v364 = vmul.f32 %v344, %v358
  %v365 = vmul.f32 %v345, %v358
  %v366 = vmul.f32 %v346, %v358
  %v367 = vmul.f32 %v347, %v358
  %v368 = vmul.f32 %v348, %v358
  %v369 = vmul.f32 %v349, %v358
  %v370 = vmul.f32 %v350, %v358
  %v371 = vmul.f32 %v351, %v358
  %v372 = vmul.f32 %v352, %v358
  %v373 = vmul.f32 %v353, %v358
  %v374 = vmul.f32 %v354, %v358
  %v375 = vlaneseq
  %v376 = vshrl.u32 %v375, 7
  %v377 = vsub.s32 0, %v376
  %v378 = vrot.slane %v230, %v377
  %v379 = vadd.f32 %v359, %v378
  %v380 = vadd.f32 %v360, %v378
  %v381 = vadd.f32 %v361, %v378
  %v382 = vadd.f32 %v362, %v378
  %v383 = vadd.f32 %v363, %v378
  %v384 = vadd.f32 %v364, %v378
  %v385 = vadd.f32 %v365, %v378
  %v386 = vadd.f32 %v366, %v378
  %v387 = vadd.f32 %v367, %v378
  %v388 = vadd.f32 %v368, %v378
  %v389 = vadd.f32 %v369, %v378
  %v390 = vadd.f32 %v370, %v378
  %v391 = vadd.f32 %v371, %v378
  %v392 = vadd.f32 %v372, %v378
  %v393 = vadd.f32 %v373, %v378
  %v394 = vadd.f32 %v374, %v378
  %vm395 = vcmp.ge.f32.partialorder %v379, 0.0
  %vm396 = vcmp.ge.f32.partialorder %v380, 0.0
  %vm397 = vcmp.ge.f32.partialorder %v381, 0.0
  %vm398 = vcmp.ge.f32.partialorder %v382, 0.0
  %vm399 = vcmp.ge.f32.partialorder %v383, 0.0
  %vm400 = vcmp.ge.f32.partialorder %v384, 0.0
  %vm401 = vcmp.ge.f32.partialorder %v385, 0.0
  %vm402 = vcmp.ge.f32.partialorder %v386, 0.0
  %vm403 = vcmp.ge.f32.partialorder %v387, 0.0
  %vm404 = vcmp.ge.f32.partialorder %v388, 0.0
  %vm405 = vcmp.ge.f32.partialorder %v389, 0.0
  %vm406 = vcmp.ge.f32.partialorder %v390, 0.0
  %vm407 = vcmp.ge.f32.partialorder %v391, 0.0
  %vm408 = vcmp.ge.f32.partialorder %v392, 0.0
  %vm409 = vcmp.ge.f32.partialorder %v393, 0.0
  %vm410 = vcmp.ge.f32.partialorder %v394, 0.0
  %v411 = vsel %vm395, 1.0, -1.0
  %v412 = vsel %vm396, 1.0, -1.0
  %v413 = vsel %vm397, 1.0, -1.0
  %v414 = vsel %vm398, 1.0, -1.0
  %v415 = vsel %vm399, 1.0, -1.0
  %v416 = vsel %vm400, 1.0, -1.0
  %v417 = vsel %vm401, 1.0, -1.0
  %v418 = vsel %vm402, 1.0, -1.0
  %v419 = vsel %vm403, 1.0, -1.0
  %v420 = vsel %vm404, 1.0, -1.0
  %v421 = vsel %vm405, 1.0, -1.0
  %v422 = vsel %vm406, 1.0, -1.0
  %v423 = vsel %vm407, 1.0, -1.0
  %v424 = vsel %vm408, 1.0, -1.0
  %v425 = vsel %vm409, 1.0, -1.0
  %v426 = vsel %vm410, 1.0, -1.0
  %v427 = vpack.c.bf16 %v412, %v411
  %v428 = vpack.c.bf16 %v414, %v413
  %v429 = vpack.c.bf16 %v416, %v415
  %v430 = vpack.c.bf16 %v418, %v417
  %v431 = vpack.c.bf16 %v420, %v419
  %v432 = vpack.c.bf16 %v422, %v421
  %v433 = vpack.c.bf16 %v424, %v423
  %v434 = vpack.c.bf16 %v426, %v425
  %v435 = vmax.f32 %v379, -1.0
  %v436 = vmax.f32 %v380, -1.0
  %v437 = vmax.f32 %v381, -1.0
  %v438 = vmax.f32 %v382, -1.0
  %v439 = vmax.f32 %v383, -1.0
  %v440 = vmax.f32 %v384, -1.0
  %v441 = vmax.f32 %v385, -1.0
  %v442 = vmax.f32 %v386, -1.0
  %v443 = vmax.f32 %v387, -1.0
  %v444 = vmax.f32 %v388, -1.0
  %v445 = vmax.f32 %v389, -1.0
  %v446 = vmax.f32 %v390, -1.0
  %v447 = vmax.f32 %v391, -1.0
  %v448 = vmax.f32 %v392, -1.0
  %v449 = vmax.f32 %v393, -1.0
  %v450 = vmax.f32 %v394, -1.0
  %v451 = vmin.f32 %v435, 1.0
  %v452 = vmin.f32 %v436, 1.0
  %v453 = vmin.f32 %v437, 1.0
  %v454 = vmin.f32 %v438, 1.0
  %v455 = vmin.f32 %v439, 1.0
  %v456 = vmin.f32 %v440, 1.0
  %v457 = vmin.f32 %v441, 1.0
  %v458 = vmin.f32 %v442, 1.0
  %v459 = vmin.f32 %v443, 1.0
  %v460 = vmin.f32 %v444, 1.0
  %v461 = vmin.f32 %v445, 1.0
  %v462 = vmin.f32 %v446, 1.0
  %v463 = vmin.f32 %v447, 1.0
  %v464 = vmin.f32 %v448, 1.0
  %v465 = vmin.f32 %v449, 1.0
  %v466 = vmin.f32 %v450, 1.0
  %v467 = vmul.f32 %v451, 15.0
  %v468 = vmul.f32 %v452, 15.0
  %v469 = vmul.f32 %v453, 15.0
  %v470 = vmul.f32 %v454, 15.0
  %v471 = vmul.f32 %v455, 15.0
  %v472 = vmul.f32 %v456, 15.0
  %v473 = vmul.f32 %v457, 15.0
  %v474 = vmul.f32 %v458, 15.0
  %v475 = vmul.f32 %v459, 15.0
  %v476 = vmul.f32 %v460, 15.0
  %v477 = vmul.f32 %v461, 15.0
  %v478 = vmul.f32 %v462, 15.0
  %v479 = vmul.f32 %v463, 15.0
  %v480 = vmul.f32 %v464, 15.0
  %v481 = vmul.f32 %v465, 15.0
  %v482 = vmul.f32 %v466, 15.0
  %v483 = vround.ne.pseudo %v467
  %v484 = vround.ne.pseudo %v468
  %v485 = vround.ne.pseudo %v469
  %v486 = vround.ne.pseudo %v470
  %v487 = vround.ne.pseudo %v471
  %v488 = vround.ne.pseudo %v472
  %v489 = vround.ne.pseudo %v473
  %v490 = vround.ne.pseudo %v474
  %v491 = vround.ne.pseudo %v475
  %v492 = vround.ne.pseudo %v476
  %v493 = vround.ne.pseudo %v477
  %v494 = vround.ne.pseudo %v478
  %v495 = vround.ne.pseudo %v479
  %v496 = vround.ne.pseudo %v480
  %v497 = vround.ne.pseudo %v481
  %v498 = vround.ne.pseudo %v482
  %v499 = vmul.f32 %v483, 0.06666667
  %v500 = vmul.f32 %v484, 0.06666667
  %v501 = vmul.f32 %v485, 0.06666667
  %v502 = vmul.f32 %v486, 0.06666667
  %v503 = vmul.f32 %v487, 0.06666667
  %v504 = vmul.f32 %v488, 0.06666667
  %v505 = vmul.f32 %v489, 0.06666667
  %v506 = vmul.f32 %v490, 0.06666667
  %v507 = vmul.f32 %v491, 0.06666667
  %v508 = vmul.f32 %v492, 0.06666667
  %v509 = vmul.f32 %v493, 0.06666667
  %v510 = vmul.f32 %v494, 0.06666667
  %v511 = vmul.f32 %v495, 0.06666667
  %v512 = vmul.f32 %v496, 0.06666667
  %v513 = vmul.f32 %v497, 0.06666667
  %v514 = vmul.f32 %v498, 0.06666667
  %v515 = vld [vmem:[%s3] sm:$0x3]
  %vm516 = vcmask 31744
  %v518 = vsel %vm516, %v427, 0
  %v521 = vsel %vm516, %v428, 0
  %v524 = vsel %vm516, %v429, 0
  %v527 = vsel %vm516, %v430, 0
  %v530 = vsel %vm516, %v431, 0
  %v533 = vsel %vm516, %v432, 0
  %v536 = vsel %vm516, %v433, 0
  %v539 = vsel %vm516, %v434, 0
  %v542 = vsel %vm125, %v515, 0
  %544 = vmatprep.subr.bf16.mxu0 0
  %545 = vmatpush1.bf16.msra.mxu0 %v542
  %546 = vmatprep.subr.bf16.mxu0 0
  %547 = vmatpush1.bf16.msra.mxu0 0
  %548 = vmatprep.subr.bf16.mxu0 0
  %549 = vmatpush1.bf16.msra.mxu0 0
  %550 = vmatprep.subr.bf16.mxu0 0
  %551 = vmatpush1.bf16.msra.mxu0 0
  %552 = vmatprep.subr.bf16.mxu0 0
  %553 = vmatpush1.bf16.msra.mxu0 0
  %554 = vmatprep.subr.bf16.mxu0 0
  %555 = vmatpush1.bf16.msra.mxu0 0
  %556 = vmatprep.subr.bf16.mxu0 0
  %557 = vmatpush1.bf16.msra.mxu0 0
  %558 = vmatprep.subr.bf16.mxu0 0
  %559 = vmatpush1.bf16.msra.mxu0 0
  %560 = vmatprep.subr.bf16.mxu0 0
  %561 = vmatpush1.bf16.msra.mxu0 0
  %562 = vmatprep.subr.bf16.mxu0 0
  %563 = vmatpush1.bf16.msra.mxu0 0
  %564 = vmatprep.subr.bf16.mxu0 0
  %565 = vmatpush1.bf16.msra.mxu0 0
  %566 = vmatprep.subr.bf16.mxu0 0
  %567 = vmatpush1.bf16.msra.mxu0 0
  %568 = vmatprep.subr.bf16.mxu0 0
  %569 = vmatpush1.bf16.msra.mxu0 0
  %570 = vmatprep.subr.bf16.mxu0 0
  %571 = vmatpush1.bf16.msra.mxu0 0
  %572 = vmatprep.subr.bf16.mxu0 0
  %573 = vmatpush1.bf16.msra.mxu0 0
  %574 = vmatprep.subr.bf16.mxu0 0
  %575 = vmatpush1.bf16.msra.mxu0 0
  %576 = vmatprep.mubr.bf16.mxu0 0
  %577 = vmatmul.mubr.bf16.gmra.mrb[0].mxu0 %v518
  %v578 = vpop.f32.mrb[0].mxu0
  %v579 = vadd.f32 0.0, %v578
  %v580 = vpop.f32.mrb[0].mxu0
  %v581 = vpop.f32.mrb[0].mxu0
  %v582 = vadd.f32 0.0, %v581
  %v583 = vpop.f32.mrb[0].mxu0
  %584 = vmatprep.mubr.bf16.mxu0 0
  %585 = vmatmul.mubr.bf16.gmra.mrb[0].mxu0 %v521
  %v586 = vpop.f32.mrb[0].mxu0
  %v587 = vadd.f32 0.0, %v586
  %v588 = vpop.f32.mrb[0].mxu0
  %v589 = vpop.f32.mrb[0].mxu0
  %v590 = vadd.f32 0.0, %v589
  %v591 = vpop.f32.mrb[0].mxu0
  %592 = vmatprep.mubr.bf16.mxu0 0
  %593 = vmatmul.mubr.bf16.gmra.mrb[0].mxu0 %v524
  %v594 = vpop.f32.mrb[0].mxu0
  %v595 = vadd.f32 0.0, %v594
  %v596 = vpop.f32.mrb[0].mxu0
  %v597 = vpop.f32.mrb[0].mxu0
  %v598 = vadd.f32 0.0, %v597
  %v599 = vpop.f32.mrb[0].mxu0
  %600 = vmatprep.mubr.bf16.mxu0 0
  %601 = vmatmul.mubr.bf16.gmra.mrb[0].mxu0 %v527
  %v602 = vpop.f32.mrb[0].mxu0
  %v603 = vadd.f32 0.0, %v602
  %v604 = vpop.f32.mrb[0].mxu0
  %v605 = vpop.f32.mrb[0].mxu0
  %v606 = vadd.f32 0.0, %v605
  %v607 = vpop.f32.mrb[0].mxu0
  %608 = vmatprep.mubr.bf16.mxu0 0
  %609 = vmatmul.mubr.bf16.gmra.mrb[0].mxu0 %v530
  %v610 = vpop.f32.mrb[0].mxu0
  %v611 = vadd.f32 0.0, %v610
  %v612 = vpop.f32.mrb[0].mxu0
  %v613 = vpop.f32.mrb[0].mxu0
  %v614 = vadd.f32 0.0, %v613
  %v615 = vpop.f32.mrb[0].mxu0
  %616 = vmatprep.mubr.bf16.mxu0 0
  %617 = vmatmul.mubr.bf16.gmra.mrb[0].mxu0 %v533
  %v618 = vpop.f32.mrb[0].mxu0
  %v619 = vadd.f32 0.0, %v618
  %v620 = vpop.f32.mrb[0].mxu0
  %v621 = vpop.f32.mrb[0].mxu0
  %v622 = vadd.f32 0.0, %v621
  %v623 = vpop.f32.mrb[0].mxu0
  %624 = vmatprep.mubr.bf16.mxu0 0
  %625 = vmatmul.mubr.bf16.gmra.mrb[0].mxu0 %v536
  %v626 = vpop.f32.mrb[0].mxu0
  %v627 = vadd.f32 0.0, %v626
  %v628 = vpop.f32.mrb[0].mxu0
  %v629 = vpop.f32.mrb[0].mxu0
  %v630 = vadd.f32 0.0, %v629
  %v631 = vpop.f32.mrb[0].mxu0
  %632 = vmatprep.mubr.bf16.mxu0 0
  %633 = vmatmul.mubr.bf16.gmra.mrb[0].mxu0 %v539
  %v634 = vpop.f32.mrb[0].mxu0
  %v635 = vadd.f32 0.0, %v634
  %v636 = vpop.f32.mrb[0].mxu0
  %v637 = vpop.f32.mrb[0].mxu0
  %v638 = vadd.f32 0.0, %v637
  %v639 = vpop.f32.mrb[0].mxu0
  %640 = vdwg.mxu0
  %v641 = vld [vmem:[%s5] sm:$0x1]
  %v642 = vld [vmem:[%s5 + $0x1] sm:$0x1]
  %v643 = vld [vmem:[%s5 + $0x2] sm:$0x1]
  %v644 = vld [vmem:[%s5 + $0x3] sm:$0x1]
  %v645 = vld [vmem:[%s5 + $0x4] sm:$0x1]
  %v646 = vlaneseq
  %v647 = vshrl.u32 %v646, 7
  %v648 = vsub.s32 0, %v647
  %v649 = vrot.slane %v641, %v648
  %v650 = vmul.f32 %v579, %v649
  %v651 = vmul.f32 %v582, %v649
  %v652 = vmul.f32 %v587, %v649
  %v653 = vmul.f32 %v590, %v649
  %v654 = vmul.f32 %v595, %v649
  %v655 = vmul.f32 %v598, %v649
  %v656 = vmul.f32 %v603, %v649
  %v657 = vmul.f32 %v606, %v649
  %v658 = vmul.f32 %v611, %v649
  %v659 = vmul.f32 %v614, %v649
  %v660 = vmul.f32 %v619, %v649
  %v661 = vmul.f32 %v622, %v649
  %v662 = vmul.f32 %v627, %v649
  %v663 = vmul.f32 %v630, %v649
  %v664 = vmul.f32 %v635, %v649
  %v665 = vmul.f32 %v638, %v649
  %v666 = vlaneseq
  %v667 = vshrl.u32 %v666, 7
  %v668 = vsub.s32 0, %v667
  %v669 = vrot.slane %v642, %v668
  %v670 = vadd.f32 %v650, %v669
  %v671 = vadd.f32 %v651, %v669
  %v672 = vadd.f32 %v652, %v669
  %v673 = vadd.f32 %v653, %v669
  %v674 = vadd.f32 %v654, %v669
  %v675 = vadd.f32 %v655, %v669
  %v676 = vadd.f32 %v656, %v669
  %v677 = vadd.f32 %v657, %v669
  %v678 = vadd.f32 %v658, %v669
  %v679 = vadd.f32 %v659, %v669
  %v680 = vadd.f32 %v660, %v669
  %v681 = vadd.f32 %v661, %v669
  %v682 = vadd.f32 %v662, %v669
  %v683 = vadd.f32 %v663, %v669
  %v684 = vadd.f32 %v664, %v669
  %v685 = vadd.f32 %v665, %v669
  %vm686 = vcmp.ge.f32.partialorder %v670, 0.0
  %vm687 = vcmp.ge.f32.partialorder %v671, 0.0
  %vm688 = vcmp.ge.f32.partialorder %v672, 0.0
  %vm689 = vcmp.ge.f32.partialorder %v673, 0.0
  %vm690 = vcmp.ge.f32.partialorder %v674, 0.0
  %vm691 = vcmp.ge.f32.partialorder %v675, 0.0
  %vm692 = vcmp.ge.f32.partialorder %v676, 0.0
  %vm693 = vcmp.ge.f32.partialorder %v677, 0.0
  %vm694 = vcmp.ge.f32.partialorder %v678, 0.0
  %vm695 = vcmp.ge.f32.partialorder %v679, 0.0
  %vm696 = vcmp.ge.f32.partialorder %v680, 0.0
  %vm697 = vcmp.ge.f32.partialorder %v681, 0.0
  %vm698 = vcmp.ge.f32.partialorder %v682, 0.0
  %vm699 = vcmp.ge.f32.partialorder %v683, 0.0
  %vm700 = vcmp.ge.f32.partialorder %v684, 0.0
  %vm701 = vcmp.ge.f32.partialorder %v685, 0.0
  %v702 = vlaneseq
  %v703 = vshrl.u32 %v702, 7
  %v704 = vsub.s32 0, %v703
  %v705 = vrot.slane %v643, %v704
  %v706 = vmul.f32 %v705, %v670
  %v707 = vmul.f32 %v705, %v671
  %v708 = vmul.f32 %v705, %v672
  %v709 = vmul.f32 %v705, %v673
  %v710 = vmul.f32 %v705, %v674
  %v711 = vmul.f32 %v705, %v675
  %v712 = vmul.f32 %v705, %v676
  %v713 = vmul.f32 %v705, %v677
  %v714 = vmul.f32 %v705, %v678
  %v715 = vmul.f32 %v705, %v679
  %v716 = vmul.f32 %v705, %v680
  %v717 = vmul.f32 %v705, %v681
  %v718 = vmul.f32 %v705, %v682
  %v719 = vmul.f32 %v705, %v683
  %v720 = vmul.f32 %v705, %v684
  %v721 = vmul.f32 %v705, %v685
  %v722 = vsel %vm686, %v670, %v706
  %v723 = vsel %vm687, %v671, %v707
  %v724 = vsel %vm688, %v672, %v708
  %v725 = vsel %vm689, %v673, %v709
  %v726 = vsel %vm690, %v674, %v710
  %v727 = vsel %vm691, %v675, %v711
  %v728 = vsel %vm692, %v676, %v712
  %v729 = vsel %vm693, %v677, %v713
  %v730 = vsel %vm694, %v678, %v714
  %v731 = vsel %vm695, %v679, %v715
  %v732 = vsel %vm696, %v680, %v716
  %v733 = vsel %vm697, %v681, %v717
  %v734 = vsel %vm698, %v682, %v718
  %v735 = vsel %vm699, %v683, %v719
  %v736 = vsel %vm700, %v684, %v720
  %v737 = vsel %vm701, %v685, %v721
  %v738 = vadd.f32 %v722, %v499
  %v739 = vadd.f32 %v723, %v500
  %v740 = vadd.f32 %v724, %v501
  %v741 = vadd.f32 %v725, %v502
  %v742 = vadd.f32 %v726, %v503
  %v743 = vadd.f32 %v727, %v504
  %v744 = vadd.f32 %v728, %v505
  %v745 = vadd.f32 %v729, %v506
  %v746 = vadd.f32 %v730, %v507
  %v747 = vadd.f32 %v731, %v508
  %v748 = vadd.f32 %v732, %v509
  %v749 = vadd.f32 %v733, %v510
  %v750 = vadd.f32 %v734, %v511
  %v751 = vadd.f32 %v735, %v512
  %v752 = vadd.f32 %v736, %v513
  %v753 = vadd.f32 %v737, %v514
  %v754 = vlaneseq
  %v755 = vshrl.u32 %v754, 7
  %v756 = vsub.s32 0, %v755
  %v757 = vrot.slane %v644, %v756
  %v758 = vmul.f32 %v738, %v757
  %v759 = vmul.f32 %v739, %v757
  %v760 = vmul.f32 %v740, %v757
  %v761 = vmul.f32 %v741, %v757
  %v762 = vmul.f32 %v742, %v757
  %v763 = vmul.f32 %v743, %v757
  %v764 = vmul.f32 %v744, %v757
  %v765 = vmul.f32 %v745, %v757
  %v766 = vmul.f32 %v746, %v757
  %v767 = vmul.f32 %v747, %v757
  %v768 = vmul.f32 %v748, %v757
  %v769 = vmul.f32 %v749, %v757
  %v770 = vmul.f32 %v750, %v757
  %v771 = vmul.f32 %v751, %v757
  %v772 = vmul.f32 %v752, %v757
  %v773 = vmul.f32 %v753, %v757
  %v774 = vlaneseq
  %v775 = vshrl.u32 %v774, 7
  %v776 = vsub.s32 0, %v775
  %v777 = vrot.slane %v645, %v776
  %v778 = vadd.f32 %v758, %v777
  %v779 = vadd.f32 %v759, %v777
  %v780 = vadd.f32 %v760, %v777
  %v781 = vadd.f32 %v761, %v777
  %v782 = vadd.f32 %v762, %v777
  %v783 = vadd.f32 %v763, %v777
  %v784 = vadd.f32 %v764, %v777
  %v785 = vadd.f32 %v765, %v777
  %v786 = vadd.f32 %v766, %v777
  %v787 = vadd.f32 %v767, %v777
  %v788 = vadd.f32 %v768, %v777
  %v789 = vadd.f32 %v769, %v777
  %v790 = vadd.f32 %v770, %v777
  %v791 = vadd.f32 %v771, %v777
  %v792 = vadd.f32 %v772, %v777
  %v793 = vadd.f32 %v773, %v777
  %794 = vst.msk [vmem:[%s6] sm:$0xff] %vm516, %v778
  %795 = vst.msk [vmem:[%s6 + $0x8] sm:$0xff] %vm516, %v779
  %796 = vst.msk [vmem:[%s6 + $0x10] sm:$0xff] %vm516, %v780
  %797 = vst.msk [vmem:[%s6 + $0x18] sm:$0xff] %vm516, %v781
  %798 = vst.msk [vmem:[%s6 + $0x20] sm:$0xff] %vm516, %v782
  %799 = vst.msk [vmem:[%s6 + $0x28] sm:$0xff] %vm516, %v783
  %800 = vst.msk [vmem:[%s6 + $0x30] sm:$0xff] %vm516, %v784
  %801 = vst.msk [vmem:[%s6 + $0x38] sm:$0xff] %vm516, %v785
  %802 = vst.msk [vmem:[%s6 + $0x40] sm:$0xff] %vm516, %v786
  %803 = vst.msk [vmem:[%s6 + $0x48] sm:$0xff] %vm516, %v787
  %804 = vst.msk [vmem:[%s6 + $0x50] sm:$0xff] %vm516, %v788
  %805 = vst.msk [vmem:[%s6 + $0x58] sm:$0xff] %vm516, %v789
  %806 = vst.msk [vmem:[%s6 + $0x60] sm:$0xff] %vm516, %v790
  %807 = vst.msk [vmem:[%s6 + $0x68] sm:$0xff] %vm516, %v791
  %808 = vst.msk [vmem:[%s6 + $0x70] sm:$0xff] %vm516, %v792
  %809 = vst.msk [vmem:[%s6 + $0x78] sm:$0xff] %vm516, %v793
  %826 = vrot.lane.b32.xlu0 %v499, 4
  %v827 = vpop.permute.xlu0 %826
  %828 = vrot.lane.b32.xlu0 %v500, 4
  %v829 = vpop.permute.xlu0 %828
  %830 = vrot.lane.b32.xlu0 %v501, 4
  %v831 = vpop.permute.xlu0 %830
  %832 = vrot.lane.b32.xlu0 %v502, 4
  %v833 = vpop.permute.xlu0 %832
  %834 = vrot.lane.b32.xlu0 %v503, 4
  %v835 = vpop.permute.xlu0 %834
  %836 = vrot.lane.b32.xlu0 %v504, 4
  %v837 = vpop.permute.xlu0 %836
  %838 = vrot.lane.b32.xlu0 %v505, 4
  %v839 = vpop.permute.xlu0 %838
  %840 = vrot.lane.b32.xlu0 %v506, 4
  %v841 = vpop.permute.xlu0 %840
  %842 = vrot.lane.b32.xlu0 %v507, 4
  %v843 = vpop.permute.xlu0 %842
  %844 = vrot.lane.b32.xlu0 %v508, 4
  %v845 = vpop.permute.xlu0 %844
  %846 = vrot.lane.b32.xlu0 %v509, 4
  %v847 = vpop.permute.xlu0 %846
  %848 = vrot.lane.b32.xlu0 %v510, 4
  %v849 = vpop.permute.xlu0 %848
  %850 = vrot.lane.b32.xlu0 %v511, 4
  %v851 = vpop.permute.xlu0 %850
  %852 = vrot.lane.b32.xlu0 %v512, 4
  %v853 = vpop.permute.xlu0 %852
  %854 = vrot.lane.b32.xlu0 %v513, 4
  %v855 = vpop.permute.xlu0 %854
  %856 = vrot.lane.b32.xlu0 %v514, 4
  %v857 = vpop.permute.xlu0 %856
  %v874 = vadd.f32 %v722, %v827
  %v875 = vadd.f32 %v723, %v829
  %v876 = vadd.f32 %v724, %v831
  %v877 = vadd.f32 %v725, %v833
  %v878 = vadd.f32 %v726, %v835
  %v879 = vadd.f32 %v727, %v837
  %v880 = vadd.f32 %v728, %v839
  %v881 = vadd.f32 %v729, %v841
  %v882 = vadd.f32 %v730, %v843
  %v883 = vadd.f32 %v731, %v845
  %v884 = vadd.f32 %v732, %v847
  %v885 = vadd.f32 %v733, %v849
  %v886 = vadd.f32 %v734, %v851
  %v887 = vadd.f32 %v735, %v853
  %v888 = vadd.f32 %v736, %v855
  %v889 = vadd.f32 %v737, %v857
  %v890 = vmul.f32 %v874, %v757
  %v891 = vmul.f32 %v875, %v757
  %v892 = vmul.f32 %v876, %v757
  %v893 = vmul.f32 %v877, %v757
  %v894 = vmul.f32 %v878, %v757
  %v895 = vmul.f32 %v879, %v757
  %v896 = vmul.f32 %v880, %v757
  %v897 = vmul.f32 %v881, %v757
  %v898 = vmul.f32 %v882, %v757
  %v899 = vmul.f32 %v883, %v757
  %v900 = vmul.f32 %v884, %v757
  %v901 = vmul.f32 %v885, %v757
  %v902 = vmul.f32 %v886, %v757
  %v903 = vmul.f32 %v887, %v757
  %v904 = vmul.f32 %v888, %v757
  %v905 = vmul.f32 %v889, %v757
  %v906 = vadd.f32 %v890, %v777
  %v907 = vadd.f32 %v891, %v777
  %v908 = vadd.f32 %v892, %v777
  %v909 = vadd.f32 %v893, %v777
  %v910 = vadd.f32 %v894, %v777
  %v911 = vadd.f32 %v895, %v777
  %v912 = vadd.f32 %v896, %v777
  %v913 = vadd.f32 %v897, %v777
  %v914 = vadd.f32 %v898, %v777
  %v915 = vadd.f32 %v899, %v777
  %v916 = vadd.f32 %v900, %v777
  %v917 = vadd.f32 %v901, %v777
  %v918 = vadd.f32 %v902, %v777
  %v919 = vadd.f32 %v903, %v777
  %v920 = vadd.f32 %v904, %v777
  %v921 = vadd.f32 %v905, %v777
  %vm922 = vcmask 64544
  %923 = vst.msk [vmem:[%s6] sm:$0xff] %vm922, %v906
  %924 = vst.msk [vmem:[%s6 + $0x8] sm:$0xff] %vm922, %v907
  %925 = vst.msk [vmem:[%s6 + $0x10] sm:$0xff] %vm922, %v908
  %926 = vst.msk [vmem:[%s6 + $0x18] sm:$0xff] %vm922, %v909
  %927 = vst.msk [vmem:[%s6 + $0x20] sm:$0xff] %vm922, %v910
  %928 = vst.msk [vmem:[%s6 + $0x28] sm:$0xff] %vm922, %v911
  %929 = vst.msk [vmem:[%s6 + $0x30] sm:$0xff] %vm922, %v912
  %930 = vst.msk [vmem:[%s6 + $0x38] sm:$0xff] %vm922, %v913
  %931 = vst.msk [vmem:[%s6 + $0x40] sm:$0xff] %vm922, %v914
  %932 = vst.msk [vmem:[%s6 + $0x48] sm:$0xff] %vm922, %v915
  %933 = vst.msk [vmem:[%s6 + $0x50] sm:$0xff] %vm922, %v916
  %934 = vst.msk [vmem:[%s6 + $0x58] sm:$0xff] %vm922, %v917
  %935 = vst.msk [vmem:[%s6 + $0x60] sm:$0xff] %vm922, %v918
  %936 = vst.msk [vmem:[%s6 + $0x68] sm:$0xff] %vm922, %v919
  %937 = vst.msk [vmem:[%s6 + $0x70] sm:$0xff] %vm922, %v920
  %938 = vst.msk [vmem:[%s6 + $0x78] sm:$0xff] %vm922, %v921
  // Predicated region
  $region26: #{building_block_forward.1} parent=0 // pred_check
    _
  $region27: #{building_block_forward.1} parent=0 // pred_check_branch
    %940 = sbr.rel (0) target = $region29
  $region28: #{building_block_forward.1} parent=0 // pred_region
    _
  $region29: #{building_block_forward.1} parent=0 // pred_fallthru
    _
  // Predicated region
  $region30: #{building_block_forward.1} parent=0 // pred_check
    _
  $region31: #{building_block_forward.1} parent=0 // pred_check_branch
    %942 = sbr.rel (0) target = $region33
  $region32: #{building_block_forward.1} parent=0 // pred_region
    _
  $region33: #{building_block_forward.1} parent=0 // pred_fallthru
    _

</llo_original>
